<compile_context>
chip_gen: v6e
topology: v6e:2x2x1
jax: 0.10.0
libtpu: 0.0.40
codegen_flags: <defaults>
</compile_context>

<pallas_src>
import jax
import jax.numpy as jnp
from jax.experimental import pallas as pl
from jax.experimental.pallas import tpu as pltpu

_LANE_CHOICES = (2048, 1024, 512, 256, 128)


def _pick_tiling():
    """Pick (block_bytes, vmem_limit_bytes) based on the chip's physical VMEM."""
    vmem_bytes = None
    try:
        info = pltpu.get_tpu_info()
        vmem_bytes = getattr(info, "vmem_capacity_bytes", None)
    except Exception:
        vmem_bytes = None
    if vmem_bytes is None:
        # Conservative fallback: assume the smallest (v7x-sized, 64 MiB) VMEM.
        vmem_bytes = 64 << 20

    if vmem_bytes <= (64 << 20):
        # v7x-class: 64 MiB physical VMEM per TensorCore.
        # 6 MiB blocks -> 4 x 6 MiB = 24 MiB double-buffered in+out.
        return (6 << 20), (44 << 20)
    # v5e / v6e: 128 MiB physical VMEM; scoped default (16/32 MiB) must be
    # raised explicitly to allow 8 MiB blocks (32 MiB total buffering).
    return (8 << 20), (48 << 20)


def _scalar_fn_kernel(c_ref, x_ref, o_ref):
    # c_ref: SMEM (2,) float32 -> [a, b] precomputed scalar coefficients
    # x_ref / o_ref: VMEM (block_rows, lane_w) float32 tiles
    a = c_ref[0]
    b = c_ref[1]
    x = x_ref[...]
    o_ref[...] = x * (a + b * x)


def special_scalar_function_pallas(x, h):
    """Elementwise special_scalar_function via a Pallas TPU kernel.

    x: float32 array of any shape. h: float32 array of shape (1,).
    """
    x = x.astype(jnp.float32)
    h = jnp.asarray(h, dtype=jnp.float32).reshape((1,))

    orig_shape = x.shape
    flat = x.reshape(-1)
    n = flat.shape[0]
    if n == 0:
        return flat.reshape(orig_shape)

    # Hoist all scalar algebra out of the per-element kernel path.
    w = h[0]
    w2 = w * w
    a = (w2 - 1.0) * (w2 - 1.0) * w
    b = (w2 - 4.0) / (w2 + 1e-9)
    coeffs = jnp.stack([a, b])  # (2,) float32, lives in SMEM

    # Pick the widest lane dimension that divides n (no pad copy needed then);
    # fall back to padding the tail to a multiple of 128 only when required.
    lane_w = None
    for cand in _LANE_CHOICES:
        if n % cand == 0:
            lane_w = cand
            break
    padded = lane_w is None
    if padded:
        # Ragged element count (n % 128 != 0): pad + final slice.  This costs
        # extra HBM copies, but only fires for lane-unaligned sizes; the
        # common aligned case below is copy-free.
        lane_w = 128
        n_pad = pl.cdiv(n, lane_w) * lane_w
        flat = jnp.pad(flat, (0, n_pad - n))

    x2d = flat.reshape(-1, lane_w)
    rows = x2d.shape[0]

    block_bytes, vmem_limit = _pick_tiling()
    block_rows = max(8, (block_bytes // (lane_w * 4)) // 8 * 8)

    if rows <= 8:
        # Tiny input: one full-extent block (always a legal block shape).
        block_rows = rows
    else:
        # Cap the block so the "parallel" grid axis has >= 2 steps: on v7x
        # both TensorCores then stream half the data each.  Edge (partial)
        # blocks are handled by Pallas' masked load/writeback.
        block_rows = min(block_rows, max(8, (rows // 2) // 8 * 8))

    grid = (pl.cdiv(rows, block_rows),)

    out2d = pl.pallas_call(
        _scalar_fn_kernel,
        out_shape=jax.ShapeDtypeStruct((rows, lane_w), jnp.float32),
        grid=grid,
        in_specs=[
            pl.BlockSpec(memory_space=pltpu.SMEM),                 # [a, b]
            pl.BlockSpec((block_rows, lane_w), lambda i: (i, 0)),  # x tile
        ],
        out_specs=pl.BlockSpec((block_rows, lane_w), lambda i: (i, 0)),
        compiler_params=pltpu.CompilerParams(
            dimension_semantics=("parallel",),
            vmem_limit_bytes=vmem_limit),
    )(coeffs, x2d)

    if padded:
        return out2d.reshape(-1)[:n].reshape(orig_shape)
    return out2d.reshape(orig_shape)


class Model:
    """JAX/Pallas equivalent of the PyTorch Model."""

    def __init__(self, init_h_value):
        self.h = jnp.array([init_h_value], dtype=jnp.float32)

    def __call__(self, x):
        return special_scalar_function_pallas(x, self.h)


def _reference(x, h):
    w = h[0]
    return (w ** 2 - 1.0) ** 2 * w * x + (w ** 2 - 4.0) * x ** 2 / (w ** 2 + 1e-9)


if __name__ == "__main__":
    key = jax.random.PRNGKey(0)
    # Small example input matching the module's elementwise semantics.
    x = jax.random.normal(key, (2, 4, 16, 16), dtype=jnp.float32)

    model = Model(init_h_value=0.5)  # deterministic parameter init

    y = jax.block_until_ready(model(x))
    y_ref = _reference(x, model.h)
    assert y.shape == x.shape and y.dtype == jnp.float32
    assert jnp.allclose(y, y_ref, rtol=1e-5, atol=1e-5), "mismatch vs reference"

    # Exercise the multi-block path (grid >= 2, both TCs on v7x).
    x2 = jax.random.normal(jax.random.PRNGKey(1), (64, 512), dtype=jnp.float32)
    y2 = jax.block_until_ready(model(x2))
    assert jnp.allclose(y2, _reference(x2, model.h), rtol=1e-5, atol=1e-5)

    # Exercise a ragged element count (pad + slice fallback path).
    x3 = jax.random.normal(jax.random.PRNGKey(2), (3, 5, 7), dtype=jnp.float32)
    y3 = jax.block_until_ready(model(x3))
    assert jnp.allclose(y3, _reference(x3, model.h), rtol=1e-5, atol=1e-5)

    print("KERNEL_OK")
</pallas_src>

<mosaic_0001>
module attributes {stable_mosaic.version = 11 : i64} {
  func.func @_scalar_fn_kernel(%arg0: i32, %arg1: memref<2xf32, #tpu.memory_space<smem>>, %arg2: memref<1x2048xf32, #tpu.memory_space<vmem>>, %arg3: memref<1x2048xf32, #tpu.memory_space<vmem>>) attributes {dimension_semantics = [#tpu.dimension_semantics<parallel>], iteration_bounds = array<i64: 1>, scalar_prefetch = 0 : i64, scratch_operands = 0 : i64, tpu.core_type = #tpu.core_type<tc>, window_params = [{transform_indices = @transform_0, window_bounds = array<i64: 2>}, {transform_indices = @transform_1, window_bounds = array<i64: 1, 2048>}, {transform_indices = @transform_2, window_bounds = array<i64: 1, 2048>}]} {
    %c0 = arith.constant 0 : index
    %0 = memref.load %arg1[%c0] : memref<2xf32, #tpu.memory_space<smem>>
    %c1 = arith.constant 1 : index
    %1 = memref.load %arg1[%c1] : memref<2xf32, #tpu.memory_space<smem>>
    %c0_0 = arith.constant 0 : index
    %c0_1 = arith.constant 0 : index
    %2 = vector.load %arg2[%c0_0, %c0_1] : memref<1x2048xf32, #tpu.memory_space<vmem>>, vector<1x2048xf32>
    %3 = vector.broadcast %1 : f32 to vector<1x2048xf32>
    %4 = arith.mulf %3, %2 : vector<1x2048xf32>
    %5 = vector.broadcast %0 : f32 to vector<1x2048xf32>
    %6 = arith.addf %5, %4 : vector<1x2048xf32>
    %7 = arith.mulf %2, %6 : vector<1x2048xf32>
    %c0_2 = arith.constant 0 : index
    %c0_3 = arith.constant 0 : index
    %8 = vector.load %arg3[%c0_2, %c0_3] : memref<1x2048xf32, #tpu.memory_space<vmem>>, vector<1x2048xf32>
    tpu.vector_store %arg3[%c0_2, %c0_3], %7 {strides = array<i32>} : memref<1x2048xf32, #tpu.memory_space<vmem>>, vector<1x2048xf32>,
    return
  }
  func.func @transform_0(%arg0: i32) -> i32 {
    %c0_i32 = arith.constant 0 : i32
    %c0_i32_0 = arith.constant 0 : i32
    return %c0_i32 : i32
  }
  func.func @transform_1(%arg0: i32) -> (i32, i32) {
    %c0_i32 = arith.constant 0 : i32
    %c0_i32_0 = arith.constant 0 : i32
    return %arg0, %c0_i32 : i32, i32
  }
  func.func @transform_2(%arg0: i32) -> (i32, i32) {
    %c0_i32 = arith.constant 0 : i32
    %c0_i32_0 = arith.constant 0 : i32
    return %arg0, %c0_i32 : i32, i32
  }
}

</mosaic_0001>

<llo_original>
// kernel: tpu_custom_call.1
$region0: #{tpu_custom_call.1}
  #allocation0 [shape = 'u32[]', space=smem, size = 0x4, offset = 0x4, fixed_abs, tag = 'smem constant byte address 0x4 - core index']
  #allocation1 [shape = 'u32[144,128]{1,0:T(1,128)}', space=vmem, size = 0x12000, scoped, tag = 'internal scratch']
  %s0 = inlined_call_operand.hbm [shape: f32[2], index: 0, kind: input, shape index: {}]
  %s1 = inlined_call_operand.hbm [shape: f32[1,2048], index: 1, kind: input, shape index: {}]
  %s2 = inlined_call_operand.hbm [shape: f32[1,2048], index: 2, kind: output, shape index: {}]
  %s3 = sld [smem:[#allocation0]]
  $region26: #{tpu_custom_call.1} parent=0
    _
  %s5 = ssub.s32 1, %s3
  %s6 = scalar_select 0, %s5, %s3
  $region1: #{tpu_custom_call.1} parent=0
    #allocation2 [shape = 'u8[512]{0}', space=smem, size = 0x200, scoped, tag = 'input window, operand 0, single buffered']
    #allocation3 [shape = 's32[1]{0}', space=sflag, size = 0x4, scoped, tag = 'scoped memory for tpu_custom_call.1']
    #allocation4 [shape = 's32[1]{0}', space=sflag, size = 0x4, scoped, tag = 'scoped memory for tpu_custom_call.1']
    #allocation5 [shape = 's32[1]{0}', space=sflag, size = 0x4, scoped, tag = 'scoped memory for tpu_custom_call.1']
    #allocation6 [shape = 'u8[8192]{0}', space=vmem, size = 0x2000, scoped, tag = 'input window, operand 1, single buffered']
    #allocation7 [shape = 'u8[8192]{0}', space=vmem, size = 0x2000, scoped, tag = 'output window, operand 0, single buffered']
    %7 = vsyncpa [#allocation5], 0
    %8 = vsyncpa [#allocation3], 0
    %9 = vsyncpa [#allocation4], 0
    // Predicated region
    $region2: #{tpu_custom_call.1} parent=1 // pred_check
      _
    $region3: #{tpu_custom_call.1} parent=1 // pred_check_branch
      %11 = sbr.rel (0) target = $region5
    $region4: #{tpu_custom_call.1} parent=1 // pred_region
      %s13 = ssub.s32 16, 16
      %14 = vsyncadd [#allocation5], %s13
      %17 = dma.hbm_to_smem %s0, 16, [#allocation2], [#allocation5]
    $region5: #{tpu_custom_call.1} parent=1 // pred_fallthru
      _
    // Predicated region
    $region6: #{tpu_custom_call.1} parent=1 // pred_check
      _
    $region7: #{tpu_custom_call.1} parent=1 // pred_check_branch
      %19 = sbr.rel (0) target = $region9
    $region8: #{tpu_custom_call.1} parent=1 // pred_region
      %s21 = ssub.s32 256, 256
      %22 = vsyncadd [#allocation3], %s21
      %s24 = sshll.u32 [#allocation6], 4
      %s25 = int_to_ptr.vmem [resolvable:$true] %s24
      %27 = dma.hbm_to_vmem [thread:$0]  %s1, 256, %s25, [#allocation3]
    $region9: #{tpu_custom_call.1} parent=1 // pred_fallthru
      _
    // Predicated region
    $region10: #{tpu_custom_call.1} parent=1 // pred_check
      _
    $region11: #{tpu_custom_call.1} parent=1 // pred_check_branch
      %29 = sbr.rel (0) target = $region13
    $region12: #{tpu_custom_call.1} parent=1 // pred_region
      %30 = dma.done [#allocation5], 16
    $region13: #{tpu_custom_call.1} parent=1 // pred_fallthru
      _
    // Predicated region
    $region14: #{tpu_custom_call.1} parent=1 // pred_check
      _
    $region15: #{tpu_custom_call.1} parent=1 // pred_check_branch
      %32 = sbr.rel (0) target = $region17
    $region16: #{tpu_custom_call.1} parent=1 // pred_region
      %33 = dma.done [#allocation3], 256
    $region17: #{tpu_custom_call.1} parent=1 // pred_fallthru
      _
    %34 = sfence
    %s35 = sld [smem:[#allocation2]]
    %s36 = sld [smem:[#allocation2 + $0x1]]
    %v37 = vld [vmem:[#allocation6] sm:$0xff]
    %v38 = vld [vmem:[#allocation6 + $0x8] sm:$0xff]
    %v39 = vstv %s36
    %v40 = vmul.f32 %v39, %v37
    %v41 = vmul.f32 %v39, %v38
    %v42 = vstv %s35
    %v43 = vadd.f32 %v42, %v40
    %v44 = vadd.f32 %v42, %v41
    %v45 = vmul.f32 %v37, %v43
    %v46 = vmul.f32 %v38, %v44
    %47 = vst [vmem:[#allocation7] sm:$0xff] %v45
    %48 = vst [vmem:[#allocation7 + $0x8] sm:$0xff] %v46
    // Predicated region
    $region18: #{tpu_custom_call.1} parent=1 // pred_check
      _
    $region19: #{tpu_custom_call.1} parent=1 // pred_check_branch
      %50 = sbr.rel (0) target = $region21
    $region20: #{tpu_custom_call.1} parent=1 // pred_region
      %s52 = ssub.s32 256, 256
      %53 = vsyncadd [#allocation4], %s52
      %s55 = sshll.u32 [#allocation7], 4
      %s56 = int_to_ptr.vmem [resolvable:$true] %s55
      %58 = dma.vmem_to_hbm [thread:$0]  %s56, 256, %s2, [#allocation4]
    $region21: #{tpu_custom_call.1} parent=1 // pred_fallthru
      _
    // Predicated region
    $region22: #{tpu_custom_call.1} parent=1 // pred_check
      _
    $region23: #{tpu_custom_call.1} parent=1 // pred_check_branch
      %60 = sbr.rel (0) target = $region25
    $region24: #{tpu_custom_call.1} parent=1 // pred_region
      %61 = dma.done [#allocation4], 256
    $region25: #{tpu_custom_call.1} parent=1 // pred_fallthru
      _
    %62 = vsyncpa [#allocation3], 1
    %63 = vsyncpa [#allocation4], 1
    %64 = vsyncpa [#allocation5], 1

</llo_original>
